<compile_context>
chip_gen: v6e
topology: v6e:2x2x1
jax: 0.10.0
libtpu: 0.0.40
codegen_flags: <defaults>
</compile_context>

<pallas_src>
import functools

import jax
import jax.numpy as jnp
from jax import lax
from jax.experimental import pallas as pl
from jax.experimental.pallas import tpu as pltpu


def _elu(x):
    # ELU(alpha=1): x if x > 0 else exp(x) - 1   (clamp exp arg for safety)
    return jnp.where(x > 0, x, jnp.exp(jnp.minimum(x, 0.0)) - 1.0)


def _round_up(x, m):
    return ((x + m - 1) // m) * m


def _vmem_budget_and_limit():
    """Generation-aware VMEM planning: (tile working-set budget, vmem_limit_bytes)."""
    cap = 64 * 1024 * 1024
    try:
        info = pltpu.get_tpu_info()
        for attr in ("vmem_capacity_bytes", "vmem_size_bytes", "vmem_bytes"):
            v = getattr(info, attr, None)
            if v:
                cap = int(v)
                break
    except Exception:
        pass
    if cap >= 100 * 1024 * 1024:
        # v5e / v6e: 128 MiB physical VMEM.
        return 64 * 1024 * 1024, 96 * 1024 * 1024
    # v7x: 64 MiB per TC (stay conservative so both cores fit when sharded).
    return 24 * 1024 * 1024, 48 * 1024 * 1024


def _pick_tm(m, d_in, dh_p, do_p, x_itemsize, y_itemsize, budget_bytes):
    """Largest power-of-two M tile whose double-buffered working set fits the
    per-generation VMEM budget."""
    w_bytes = 2 * (d_in * dh_p + dh_p * do_p) * x_itemsize + 32 * (dh_p + do_p)
    tm = 2048
    while tm > 8:
        tile_bytes = (2 * tm * d_in * x_itemsize                 # x tile (2 bufs)
                      + 2 * tm * do_p * max(4, y_itemsize)       # y/out tile (2 bufs)
                      + tm * (dh_p + do_p) * 4)                  # f32 activations
        if w_bytes + tile_bytes <= budget_bytes:
            break
        tm //= 2
    return max(8, min(tm, _round_up(m, 8)))


def _should_recompute(d_in, dh_p, do_p, y_itemsize):
    """Recompute y in pass 2 when the extra matmul FLOPs/row stay far below the
    HBM cost of writing + re-reading y (MXU has slack; the kernel is HBM-bound)."""
    extra_flops_per_row = 2 * (d_in * dh_p + dh_p * do_p)
    y_bytes_per_row = 2 * do_p * y_itemsize
    return extra_flops_per_row <= 60 * y_bytes_per_row


def _const_spec(shape):
    """Constant-index-map block: VMEM-resident across all grid steps."""
    zeros = (0,) * len(shape)
    return pl.BlockSpec(shape, lambda i, _z=zeros: _z)


# ----------------------------------------------------------------------------
# Kernel bodies
# ----------------------------------------------------------------------------

def _fwd(x_ref, w1_ref, b1_ref, w2_ref, b2_ref):
    """ELU(Linear2(ELU(Linear1(x)))) with f32 accumulation / f32 elementwise."""
    h = jnp.dot(x_ref[...], w1_ref[...], preferred_element_type=jnp.float32)
    h = _elu(h + b1_ref[...])                                   # (TM, Dh_p) f32
    y = jnp.dot(h.astype(w2_ref.dtype), w2_ref[...],
                preferred_element_type=jnp.float32)
    return _elu(y + b2_ref[...])                                # (TM, Do_p) f32


def _partial_stats(y, tm, m_true, mask_rows):
    """Per-tile partial BN statistics; padded / out-of-range rows masked out."""
    ys = y
    if mask_rows:
        row = pl.program_id(0) * tm + lax.broadcasted_iota(jnp.int32, (tm, 1), 0)
        ys = jnp.where(row < m_true, y, 0.0)
    sums = jnp.sum(ys, axis=0, keepdims=True)                   # (1, Do_p)
    sumsq = jnp.sum(ys * ys, axis=0, keepdims=True)             # (1, Do_p)
    return jnp.concatenate([sums, sumsq], axis=0)[None]         # (1, 2, Do_p)


def _scale_shift(stats, gamma, beta, m_true, eps):
    """Fold per-tile partials -> BN scale/shift (all f32, done in-kernel)."""
    tot = jnp.sum(stats, axis=0)                                # (2, Do_p)
    mean = tot[0:1, :] * (1.0 / m_true)                         # (1, Do_p)
    ex2 = tot[1:2, :] * (1.0 / m_true)
    var = jnp.maximum(ex2 - mean * mean, 0.0)                   # biased variance
    inv = lax.rsqrt(var + eps)
    scale = gamma * inv
    shift = beta - mean * scale
    return scale, shift


def _stats_kernel(x_ref, w1_ref, b1_ref, w2_ref, b2_ref, stats_ref, *,
                  tm, m_true, mask_rows):
    y = _fwd(x_ref, w1_ref, b1_ref, w2_ref, b2_ref)
    stats_ref[...] = _partial_stats(y, tm, m_true, mask_rows)


def _stats_y_kernel(x_ref, w1_ref, b1_ref, w2_ref, b2_ref, y_ref, stats_ref, *,
                    tm, m_true, mask_rows):
    y = _fwd(x_ref, w1_ref, b1_ref, w2_ref, b2_ref)
    y_ref[...] = y.astype(y_ref.dtype)
    stats_ref[...] = _partial_stats(y, tm, m_true, mask_rows)


def _recompute_bn_kernel(x_ref, w1_ref, b1_ref, w2_ref, b2_ref,
                         stats_ref, gamma_ref, beta_ref, o_ref, *,
                         d_out, m_true, eps):
    y = _fwd(x_ref, w1_ref, b1_ref, w2_ref, b2_ref)
    scale, shift = _scale_shift(stats_ref[...], gamma_ref[...], beta_ref[...],
                                m_true, eps)
    out = y * scale + shift
    o_ref[...] = out[:, :d_out].astype(o_ref.dtype)


def _apply_bn_kernel(y_ref, stats_ref, gamma_ref, beta_ref, o_ref, *,
                     d_out, m_true, eps):
    scale, shift = _scale_shift(stats_ref[...], gamma_ref[...], beta_ref[...],
                                m_true, eps)
    out = y_ref[...].astype(jnp.float32) * scale + shift
    o_ref[...] = out[:, :d_out].astype(o_ref.dtype)


# ----------------------------------------------------------------------------
# Wrapper
# ----------------------------------------------------------------------------

def mlp_block(x, w1, b1, w2, b2, gamma, beta, *,
              eps=1e-5, use_bf16_matmul=True, force_path=None):
    """x: (B, N, ...feature dims...) -> (B, N, out_dims)."""
    B, N = x.shape[0], x.shape[1]
    x2d = x.reshape(B * N, -1).astype(jnp.float32)              # (M, D_in)
    M, D_in = x2d.shape
    D_h, D_out = w1.shape[1], w2.shape[1]

    # Lane-dense feature dims: pad hidden/out to multiples of 128 (padding is
    # exact: ELU(0)=0, padded gamma/beta=0; padded columns trimmed in-kernel).
    Dh_p = _round_up(D_h, 128)
    Do_p = _round_up(D_out, 128)
    w1p = jnp.pad(w1.astype(jnp.float32), ((0, 0), (0, Dh_p - D_h)))
    w2p = jnp.pad(w2.astype(jnp.float32), ((0, Dh_p - D_h), (0, Do_p - D_out)))
    b1p = jnp.pad(b1.reshape(1, D_h).astype(jnp.float32), ((0, 0), (0, Dh_p - D_h)))
    b2p = jnp.pad(b2.reshape(1, D_out).astype(jnp.float32), ((0, 0), (0, Do_p - D_out)))
    gp = jnp.pad(gamma.reshape(1, D_out).astype(jnp.float32), ((0, 0), (0, Do_p - D_out)))
    bp = jnp.pad(beta.reshape(1, D_out).astype(jnp.float32), ((0, 0), (0, Do_p - D_out)))

    if use_bf16_matmul:
        # bf16 MXU operands + f32 accumulation: big MXU win on v6e/v7x and
        # halves x's HBM traffic on mem-bound v5e.  Elementwise stays f32.
        x2d = x2d.astype(jnp.bfloat16)
        w1p = w1p.astype(jnp.bfloat16)
        w2p = w2p.astype(jnp.bfloat16)

    x_itemsize = x2d.dtype.itemsize
    y_dtype = jnp.bfloat16 if use_bf16_matmul else jnp.float32   # stored-y path only
    y_itemsize = jnp.dtype(y_dtype).itemsize

    recompute = _should_recompute(D_in, Dh_p, Do_p, y_itemsize)
    if force_path is not None:
        recompute = (force_path == "recompute")

    budget, vmem_limit = _vmem_budget_and_limit()
    TM = _pick_tm(M, D_in, Dh_p, Do_p, x_itemsize, y_itemsize, budget)
    grid_m = pl.cdiv(M, TM)          # no jnp.pad of x along M: edge tile is masked
    mask_rows = (grid_m * TM != M)

    cparams = pltpu.CompilerParams(
        dimension_semantics=("parallel",),   # no cross-tile carry -> megacore-safe
        vmem_limit_bytes=vmem_limit)

    fwd_specs = [
        pl.BlockSpec((TM, D_in), lambda i: (i, 0)),
        _const_spec((D_in, Dh_p)),
        _const_spec((1, Dh_p)),
        _const_spec((Dh_p, Do_p)),
        _const_spec((1, Do_p)),
    ]

    mm_flops = 2 * M * (D_in * Dh_p + Dh_p * Do_p)
    elu_flops = 10 * M * (Dh_p + Do_p)
    w_bytes = (D_in * Dh_p + Dh_p * Do_p) * x_itemsize + (Dh_p + Do_p) * 4
    stats_bytes = grid_m * 2 * Do_p * 4

    if recompute:
        # ---------------- Pass 1: partial BN statistics only -----------------
        stats = pl.pallas_call(
            functools.partial(_stats_kernel, tm=TM, m_true=M, mask_rows=mask_rows),
            out_shape=jax.ShapeDtypeStruct((grid_m, 2, Do_p), jnp.float32),
            grid=(grid_m,),
            in_specs=fwd_specs,
            out_specs=pl.BlockSpec((1, 2, Do_p), lambda i: (i, 0, 0)),
            compiler_params=cparams,
            cost_estimate=pl.CostEstimate(
                flops=mm_flops + elu_flops,
                transcendentals=M * (Dh_p + Do_p),
                bytes_accessed=M * D_in * x_itemsize + w_bytes + stats_bytes),
        )(x2d, w1p, b1p, w2p, b2p)

        # -------- Pass 2: recompute y, normalize, write trimmed output -------
        out2d = pl.pallas_call(
            functools.partial(_recompute_bn_kernel, d_out=D_out,
                              m_true=float(M), eps=eps),
            out_shape=jax.ShapeDtypeStruct((M, D_out), jnp.float32),
            grid=(grid_m,),
            in_specs=fwd_specs + [
                _const_spec((grid_m, 2, Do_p)),
                _const_spec((1, Do_p)),
                _const_spec((1, Do_p)),
            ],
            out_specs=pl.BlockSpec((TM, D_out), lambda i: (i, 0)),
            compiler_params=cparams,
            cost_estimate=pl.CostEstimate(
                flops=mm_flops + elu_flops + 4 * M * Do_p + 2 * grid_m * Do_p,
                transcendentals=M * (Dh_p + Do_p) + Do_p,
                bytes_accessed=(M * D_in * x_itemsize + w_bytes + stats_bytes
                                + 2 * Do_p * 4 + M * D_out * 4)),
        )(x2d, w1p, b1p, w2p, b2p, stats, gp, bp)

    else:
        # -------- Pass 1: stats + stored y (bf16 on the bf16-matmul path) ----
        y, stats = pl.pallas_call(
            functools.partial(_stats_y_kernel, tm=TM, m_true=M, mask_rows=mask_rows),
            out_shape=(jax.ShapeDtypeStruct((M, Do_p), y_dtype),
                       jax.ShapeDtypeStruct((grid_m, 2, Do_p), jnp.float32)),
            grid=(grid_m,),
            in_specs=fwd_specs,
            out_specs=(pl.BlockSpec((TM, Do_p), lambda i: (i, 0)),
                       pl.BlockSpec((1, 2, Do_p), lambda i: (i, 0, 0))),
            compiler_params=cparams,
            cost_estimate=pl.CostEstimate(
                flops=mm_flops + elu_flops,
                transcendentals=M * (Dh_p + Do_p),
                bytes_accessed=(M * D_in * x_itemsize + w_bytes + stats_bytes
                                + M * Do_p * y_itemsize)),
        )(x2d, w1p, b1p, w2p, b2p)

        # -------- Pass 2: pure scale/shift, larger tiles (mem-bound) ---------
        TM2 = TM
        while (TM2 * 2 <= _round_up(M, 8)
               and 2 * (TM2 * 2) * (Do_p * y_itemsize + D_out * 4)
               + 2 * stats_bytes <= budget
               and TM2 < 4096):
            TM2 *= 2
        grid2 = pl.cdiv(M, TM2)
        out2d = pl.pallas_call(
            functools.partial(_apply_bn_kernel, d_out=D_out,
                              m_true=float(M), eps=eps),
            out_shape=jax.ShapeDtypeStruct((M, D_out), jnp.float32),
            grid=(grid2,),
            in_specs=[
                pl.BlockSpec((TM2, Do_p), lambda i: (i, 0)),
                _const_spec((grid_m, 2, Do_p)),
                _const_spec((1, Do_p)),
                _const_spec((1, Do_p)),
            ],
            out_specs=pl.BlockSpec((TM2, D_out), lambda i: (i, 0)),
            compiler_params=cparams,
            cost_estimate=pl.CostEstimate(
                flops=4 * M * Do_p + 2 * grid_m * Do_p,
                transcendentals=Do_p,
                bytes_accessed=(M * Do_p * y_itemsize + stats_bytes
                                + 2 * Do_p * 4 + M * D_out * 4)),
        )(y, stats, gp, bp)

    return out2d.reshape(B, N, D_out)


# ----------------------------------------------------------------------------
# Reference / init / self-test
# ----------------------------------------------------------------------------

def _reference(x, w1, b1, w2, b2, gamma, beta, eps=1e-5):
    """Pure-JAX reference matching the PyTorch forward (training-mode BN)."""
    B, N = x.shape[0], x.shape[1]
    x2d = x.reshape(B * N, -1)
    h = _elu(x2d @ w1 + b1.reshape(1, -1))
    y = _elu(h @ w2 + b2.reshape(1, -1))
    mean = jnp.mean(y, axis=0, keepdims=True)
    var = jnp.mean((y - mean) ** 2, axis=0, keepdims=True)
    out = (y - mean) * lax.rsqrt(var + eps) * gamma.reshape(1, -1) + beta.reshape(1, -1)
    return out.reshape(B, N, -1)


def init_params(key, in_dims, hidden_dims, out_dims):
    """Deterministic init mimicking PyTorch nn.Linear default (U[-1/sqrt(fan_in), ...])."""
    k1, k2, k3, k4 = jax.random.split(key, 4)
    lim1 = 1.0 / jnp.sqrt(in_dims)
    lim2 = 1.0 / jnp.sqrt(hidden_dims)
    w1 = jax.random.uniform(k1, (in_dims, hidden_dims), jnp.float32, -lim1, lim1)
    b1 = jax.random.uniform(k2, (1, hidden_dims), jnp.float32, -lim1, lim1)
    w2 = jax.random.uniform(k3, (hidden_dims, out_dims), jnp.float32, -lim2, lim2)
    b2 = jax.random.uniform(k4, (1, out_dims), jnp.float32, -lim2, lim2)
    gamma = jnp.ones((1, out_dims), jnp.float32)   # BatchNorm1d weight
    beta = jnp.zeros((1, out_dims), jnp.float32)   # BatchNorm1d bias
    return w1, b1, w2, b2, gamma, beta


if __name__ == "__main__":
    key = jax.random.PRNGKey(0)
    kx, kp = jax.random.split(key)

    # Input: (B=2, N=8 objects, 4x4 trailing features) -> flattened in_dims=16
    B, N = 2, 8
    x = jax.random.normal(kx, (B, N, 4, 4), dtype=jnp.float32)

    in_dims, hidden_dims, out_dims = 16, 32, 16
    params = init_params(kp, in_dims, hidden_dims, out_dims)

    ref = _reference(x, *params)

    # Default build: bf16 MXU operands + f32 accumulation, recompute-in-pass-2.
    out = jax.jit(mlp_block)(x, *params)
    jax.block_until_ready(out)
    assert out.shape == (B, N, out_dims), out.shape
    assert bool(jnp.isfinite(out).all())

    # Exact-f32 recompute path checked against the pure-JAX reference.
    out_f32 = jax.jit(functools.partial(mlp_block, use_bf16_matmul=False))(x, *params)
    jax.block_until_ready(out_f32)
    assert bool(jnp.allclose(out_f32, ref, atol=1e-4, rtol=1e-3)), \
        float(jnp.max(jnp.abs(out_f32 - ref)))

    # Stored-y fallback path (used automatically for large D_h/D_out) — also
    # exercised here in f32 to keep it verified.
    out_st = jax.jit(functools.partial(mlp_block, use_bf16_matmul=False,
                                       force_path="stored"))(x, *params)
    jax.block_until_ready(out_st)
    assert bool(jnp.allclose(out_st, ref, atol=1e-4, rtol=1e-3)), \
        float(jnp.max(jnp.abs(out_st - ref)))

    print("KERNEL_OK")
</pallas_src>

<mosaic_0001>
module attributes {stable_mosaic.version = 11 : i64} {
  func.func @_stats_y_kernel(%arg0: i32, %arg1: memref<16x16xbf16, #tpu.memory_space<vmem>>, %arg2: memref<16x128xbf16, #tpu.memory_space<vmem>>, %arg3: memref<1x128xf32, #tpu.memory_space<vmem>>, %arg4: memref<128x128xbf16, #tpu.memory_space<vmem>>, %arg5: memref<1x128xf32, #tpu.memory_space<vmem>>, %arg6: memref<16x128xbf16, #tpu.memory_space<vmem>>, %arg7: memref<1x2x128xf32, #tpu.memory_space<vmem>>) attributes {dimension_semantics = [#tpu.dimension_semantics<parallel>], iteration_bounds = array<i64: 1>, scalar_prefetch = 0 : i64, scratch_operands = 0 : i64, tpu.core_type = #tpu.core_type<tc>, window_params = [{transform_indices = @transform_0, window_bounds = array<i64: 16, 16>}, {pipeline_mode = #tpu.pipeline_mode<synchronous>, transform_indices = @transform_1, window_bounds = array<i64: 16, 128>}, {pipeline_mode = #tpu.pipeline_mode<synchronous>, transform_indices = @transform_2, window_bounds = array<i64: 1, 128>}, {pipeline_mode = #tpu.pipeline_mode<synchronous>, transform_indices = @transform_3, window_bounds = array<i64: 128, 128>}, {pipeline_mode = #tpu.pipeline_mode<synchronous>, transform_indices = @transform_4, window_bounds = array<i64: 1, 128>}, {transform_indices = @transform_5, window_bounds = array<i64: 16, 128>}, {transform_indices = @transform_6, window_bounds = array<i64: 1, 2, 128>}]} {
    %c0 = arith.constant 0 : index
    %c0_0 = arith.constant 0 : index
    %0 = vector.load %arg1[%c0, %c0_0] : memref<16x16xbf16, #tpu.memory_space<vmem>>, vector<16x16xbf16>
    %c0_1 = arith.constant 0 : index
    %c0_2 = arith.constant 0 : index
    %1 = vector.load %arg2[%c0_1, %c0_2] : memref<16x128xbf16, #tpu.memory_space<vmem>>, vector<16x128xbf16>
    %cst = arith.constant dense<0.000000e+00> : vector<16x128xf32>
    %2 = tpu.matmul %0, %1, %cst {dimension_numbers = #tpu.dot_dimension_numbers<[1], [0], [0], [1], [0, 0, 1, 1], [], []>} : vector<16x16xbf16>, vector<16x128xbf16>, vector<16x128xf32> -> vector<16x128xf32>
    %c0_3 = arith.constant 0 : index
    %c0_4 = arith.constant 0 : index
    %3 = vector.load %arg3[%c0_3, %c0_4] : memref<1x128xf32, #tpu.memory_space<vmem>>, vector<1x128xf32>
    %4 = vector.broadcast %3 : vector<1x128xf32> to vector<16x128xf32>
    %5 = arith.addf %2, %4 : vector<16x128xf32>
    %cst_5 = arith.constant 0.000000e+00 : f32
    %6 = vector.broadcast %cst_5 : f32 to vector<16x128xf32>
    %7 = arith.cmpf ogt, %5, %6 : vector<16x128xf32>
    %cst_6 = arith.constant 0.000000e+00 : f32
    %8 = vector.broadcast %cst_6 : f32 to vector<16x128xf32>
    %9 = arith.minimumf %5, %8 : vector<16x128xf32>
    %10 = math.exp %9 : vector<16x128xf32>
    %cst_7 = arith.constant 1.000000e+00 : f32
    %11 = vector.broadcast %cst_7 : f32 to vector<16x128xf32>
    %12 = arith.subf %10, %11 : vector<16x128xf32>
    %13 = arith.select %7, %5, %12 : vector<16x128xi1>, vector<16x128xf32>
    %14 = arith.truncf %13 : vector<16x128xf32> to vector<16x128xbf16>
    %c0_8 = arith.constant 0 : index
    %c0_9 = arith.constant 0 : index
    %15 = vector.load %arg4[%c0_8, %c0_9] : memref<128x128xbf16, #tpu.memory_space<vmem>>, vector<128x128xbf16>
    %cst_10 = arith.constant dense<0.000000e+00> : vector<16x128xf32>
    %16 = tpu.matmul %14, %15, %cst_10 {dimension_numbers = #tpu.dot_dimension_numbers<[1], [0], [0], [1], [0, 0, 1, 1], [], []>} : vector<16x128xbf16>, vector<128x128xbf16>, vector<16x128xf32> -> vector<16x128xf32>
    %c0_11 = arith.constant 0 : index
    %c0_12 = arith.constant 0 : index
    %17 = vector.load %arg5[%c0_11, %c0_12] : memref<1x128xf32, #tpu.memory_space<vmem>>, vector<1x128xf32>
    %18 = vector.broadcast %17 : vector<1x128xf32> to vector<16x128xf32>
    %19 = arith.addf %16, %18 : vector<16x128xf32>
    %cst_13 = arith.constant 0.000000e+00 : f32
    %20 = vector.broadcast %cst_13 : f32 to vector<16x128xf32>
    %21 = arith.cmpf ogt, %19, %20 : vector<16x128xf32>
    %cst_14 = arith.constant 0.000000e+00 : f32
    %22 = vector.broadcast %cst_14 : f32 to vector<16x128xf32>
    %23 = arith.minimumf %19, %22 : vector<16x128xf32>
    %24 = math.exp %23 : vector<16x128xf32>
    %cst_15 = arith.constant 1.000000e+00 : f32
    %25 = vector.broadcast %cst_15 : f32 to vector<16x128xf32>
    %26 = arith.subf %24, %25 : vector<16x128xf32>
    %27 = arith.select %21, %19, %26 : vector<16x128xi1>, vector<16x128xf32>
    %28 = arith.truncf %27 : vector<16x128xf32> to vector<16x128xbf16>
    %c0_16 = arith.constant 0 : index
    %c0_17 = arith.constant 0 : index
    %29 = vector.load %arg6[%c0_16, %c0_17] : memref<16x128xbf16, #tpu.memory_space<vmem>>, vector<16x128xbf16>
    tpu.vector_store %arg6[%c0_16, %c0_17], %28 {strides = array<i32>} : memref<16x128xbf16, #tpu.memory_space<vmem>>, vector<16x128xbf16>,
    %cst_18 = arith.constant dense<0.000000e+00> : vector<128xf32>
    %30 = vector.multi_reduction <add>, %27, %cst_18 [0] : vector<16x128xf32> to vector<128xf32>
    %31 = vector.shape_cast %30 : vector<128xf32> to vector<1x128xf32>
    %32 = arith.mulf %27, %27 : vector<16x128xf32>
    %cst_19 = arith.constant dense<0.000000e+00> : vector<128xf32>
    %33 = vector.multi_reduction <add>, %32, %cst_19 [0] : vector<16x128xf32> to vector<128xf32>
    %34 = vector.shape_cast %33 : vector<128xf32> to vector<1x128xf32>
    %35 = tpu.concatenate %31, %34 in 0 : vector<1x128xf32>, vector<1x128xf32> -> vector<2x128xf32>
    %36 = vector.shape_cast %35 : vector<2x128xf32> to vector<1x2x128xf32>
    %c0_20 = arith.constant 0 : index
    %c0_21 = arith.constant 0 : index
    %c0_22 = arith.constant 0 : index
    %37 = vector.load %arg7[%c0_20, %c0_21, %c0_22] : memref<1x2x128xf32, #tpu.memory_space<vmem>>, vector<1x2x128xf32>
    tpu.vector_store %arg7[%c0_20, %c0_21, %c0_22], %36 {strides = array<i32>} : memref<1x2x128xf32, #tpu.memory_space<vmem>>, vector<1x2x128xf32>,
    return
  }
  func.func @transform_0(%arg0: i32) -> (i32, i32) {
    %c0_i32 = arith.constant 0 : i32
    %c0_i32_0 = arith.constant 0 : i32
    return %arg0, %c0_i32 : i32, i32
  }
  func.func @transform_1(%arg0: i32) -> (i32, i32) {
    %c0_i32 = arith.constant 0 : i32
    %c0_i32_0 = arith.constant 0 : i32
    %c0_i32_1 = arith.constant 0 : i32
    return %c0_i32, %c0_i32_0 : i32, i32
  }
  func.func @transform_2(%arg0: i32) -> (i32, i32) {
    %c0_i32 = arith.constant 0 : i32
    %c0_i32_0 = arith.constant 0 : i32
    %c0_i32_1 = arith.constant 0 : i32
    return %c0_i32, %c0_i32_0 : i32, i32
  }
  func.func @transform_3(%arg0: i32) -> (i32, i32) {
    %c0_i32 = arith.constant 0 : i32
    %c0_i32_0 = arith.constant 0 : i32
    %c0_i32_1 = arith.constant 0 : i32
    return %c0_i32, %c0_i32_0 : i32, i32
  }
  func.func @transform_4(%arg0: i32) -> (i32, i32) {
    %c0_i32 = arith.constant 0 : i32
    %c0_i32_0 = arith.constant 0 : i32
    %c0_i32_1 = arith.constant 0 : i32
    return %c0_i32, %c0_i32_0 : i32, i32
  }
  func.func @transform_5(%arg0: i32) -> (i32, i32) {
    %c0_i32 = arith.constant 0 : i32
    %c0_i32_0 = arith.constant 0 : i32
    return %arg0, %c0_i32 : i32, i32
  }
  func.func @transform_6(%arg0: i32) -> (i32, i32, i32) {
    %c0_i32 = arith.constant 0 : i32
    %c0_i32_0 = arith.constant 0 : i32
    %c0_i32_1 = arith.constant 0 : i32
    return %arg0, %c0_i32, %c0_i32_0 : i32, i32, i32
  }
}

module attributes {stable_mosaic.version = 11 : i64} {
  func.func @_apply_bn_kernel(%arg0: i32, %arg1: memref<16x128xbf16, #tpu.memory_space<vmem>>, %arg2: memref<1x2x128xf32, #tpu.memory_space<vmem>>, %arg3: memref<1x128xf32, #tpu.memory_space<vmem>>, %arg4: memref<1x128xf32, #tpu.memory_space<vmem>>, %arg5: memref<16x16xf32, #tpu.memory_space<vmem>>) attributes {dimension_semantics = [#tpu.dimension_semantics<parallel>], iteration_bounds = array<i64: 1>, scalar_prefetch = 0 : i64, scratch_operands = 0 : i64, tpu.core_type = #tpu.core_type<tc>, window_params = [{transform_indices = @transform_0, window_bounds = array<i64: 16, 128>}, {pipeline_mode = #tpu.pipeline_mode<synchronous>, transform_indices = @transform_1, window_bounds = array<i64: 1, 2, 128>}, {pipeline_mode = #tpu.pipeline_mode<synchronous>, transform_indices = @transform_2, window_bounds = array<i64: 1, 128>}, {pipeline_mode = #tpu.pipeline_mode<synchronous>, transform_indices = @transform_3, window_bounds = array<i64: 1, 128>}, {transform_indices = @transform_4, window_bounds = array<i64: 16, 16>}]} {
    %c0 = arith.constant 0 : index
    %c0_0 = arith.constant 0 : index
    %c0_1 = arith.constant 0 : index
    %0 = vector.load %arg2[%c0, %c0_0, %c0_1] : memref<1x2x128xf32, #tpu.memory_space<vmem>>, vector<1x2x128xf32>
    %c0_2 = arith.constant 0 : index
    %c0_3 = arith.constant 0 : index
    %1 = vector.load %arg3[%c0_2, %c0_3] : memref<1x128xf32, #tpu.memory_space<vmem>>, vector<1x128xf32>
    %c0_4 = arith.constant 0 : index
    %c0_5 = arith.constant 0 : index
    %2 = vector.load %arg4[%c0_4, %c0_5] : memref<1x128xf32, #tpu.memory_space<vmem>>, vector<1x128xf32>
    %cst = arith.constant dense<0.000000e+00> : vector<2x128xf32>
    %3 = vector.multi_reduction <add>, %0, %cst [0] : vector<1x2x128xf32> to vector<2x128xf32>
    %4 = vector.extract_strided_slice %3 {offsets = [0, 0], sizes = [1, 128], strides = [1, 1]} : vector<2x128xf32> to vector<1x128xf32>
    %cst_6 = arith.constant 6.250000e-02 : f32
    %5 = vector.broadcast %cst_6 : f32 to vector<1x128xf32>
    %6 = arith.mulf %4, %5 : vector<1x128xf32>
    %7 = vector.extract_strided_slice %3 {offsets = [1, 0], sizes = [1, 128], strides = [1, 1]} : vector<2x128xf32> to vector<1x128xf32>
    %cst_7 = arith.constant 6.250000e-02 : f32
    %8 = vector.broadcast %cst_7 : f32 to vector<1x128xf32>
    %9 = arith.mulf %7, %8 : vector<1x128xf32>
    %10 = arith.mulf %6, %6 : vector<1x128xf32>
    %11 = arith.subf %9, %10 : vector<1x128xf32>
    %cst_8 = arith.constant 0.000000e+00 : f32
    %12 = vector.broadcast %cst_8 : f32 to vector<1x128xf32>
    %13 = arith.maximumf %11, %12 : vector<1x128xf32>
    %cst_9 = arith.constant 9.99999974E-6 : f32
    %14 = vector.broadcast %cst_9 : f32 to vector<1x128xf32>
    %15 = arith.addf %13, %14 : vector<1x128xf32>
    %16 = math.rsqrt %15 : vector<1x128xf32>
    %17 = arith.mulf %1, %16 : vector<1x128xf32>
    %18 = arith.mulf %6, %17 : vector<1x128xf32>
    %19 = arith.subf %2, %18 : vector<1x128xf32>
    %c0_10 = arith.constant 0 : index
    %c0_11 = arith.constant 0 : index
    %20 = vector.load %arg1[%c0_10, %c0_11] : memref<16x128xbf16, #tpu.memory_space<vmem>>, vector<16x128xbf16>
    %21 = arith.extf %20 : vector<16x128xbf16> to vector<16x128xf32>
    %22 = vector.broadcast %17 : vector<1x128xf32> to vector<16x128xf32>
    %23 = arith.mulf %21, %22 : vector<16x128xf32>
    %24 = vector.broadcast %19 : vector<1x128xf32> to vector<16x128xf32>
    %25 = arith.addf %23, %24 : vector<16x128xf32>
    %26 = vector.extract_strided_slice %25 {offsets = [0, 0], sizes = [16, 16], strides = [1, 1]} : vector<16x128xf32> to vector<16x16xf32>
    %c0_12 = arith.constant 0 : index
    %c0_13 = arith.constant 0 : index
    %27 = vector.load %arg5[%c0_12, %c0_13] : memref<16x16xf32, #tpu.memory_space<vmem>>, vector<16x16xf32>
    tpu.vector_store %arg5[%c0_12, %c0_13], %26 {strides = array<i32>} : memref<16x16xf32, #tpu.memory_space<vmem>>, vector<16x16xf32>,
    return
  }
  func.func @transform_0(%arg0: i32) -> (i32, i32) {
    %c0_i32 = arith.constant 0 : i32
    %c0_i32_0 = arith.constant 0 : i32
    return %arg0, %c0_i32 : i32, i32
  }
  func.func @transform_1(%arg0: i32) -> (i32, i32, i32) {
    %c0_i32 = arith.constant 0 : i32
    %c0_i32_0 = arith.constant 0 : i32
    %c0_i32_1 = arith.constant 0 : i32
    %c0_i32_2 = arith.constant 0 : i32
    return %c0_i32, %c0_i32_0, %c0_i32_1 : i32, i32, i32
  }
  func.func @transform_2(%arg0: i32) -> (i32, i32) {
    %c0_i32 = arith.constant 0 : i32
    %c0_i32_0 = arith.constant 0 : i32
    %c0_i32_1 = arith.constant 0 : i32
    return %c0_i32, %c0_i32_0 : i32, i32
  }
  func.func @transform_3(%arg0: i32) -> (i32, i32) {
    %c0_i32 = arith.constant 0 : i32
    %c0_i32_0 = arith.constant 0 : i32
    %c0_i32_1 = arith.constant 0 : i32
    return %c0_i32, %c0_i32_0 : i32, i32
  }
  func.func @transform_4(%arg0: i32) -> (i32, i32) {
    %c0_i32 = arith.constant 0 : i32
    %c0_i32_0 = arith.constant 0 : i32
    return %arg0, %c0_i32 : i32, i32
  }
}

</mosaic_0001>

<llo_original>
// kernel: mlp_block.3
$region0: #{mlp_block.3}
  #allocation0 [shape = 'u32[]', space=smem, size = 0x4, offset = 0x4, fixed_abs, tag = 'smem constant byte address 0x4 - core index']
  #allocation1 [shape = 'u32[144,128]{1,0:T(1,128)}', space=vmem, size = 0x12000, scoped, tag = 'internal scratch']
  %s0 = inlined_call_operand.vmem [shape: bf16[16,128], index: 0, kind: input, shape index: {}]
  %s1 = inlined_call_operand.vmem [shape: f32[1,2,128], index: 1, kind: input, shape index: {}]
  %s2 = inlined_call_operand.vmem [shape: f32[1,128], index: 2, kind: input, shape index: {}]
  %s3 = inlined_call_operand.vmem [shape: f32[1,128], index: 3, kind: input, shape index: {}]
  %s4 = inlined_call_operand.hbm [shape: f32[16,16], index: 4, kind: output, shape index: {}]
  %s5 = sld [smem:[#allocation0]]
  $region26: #{mlp_block.3} parent=0
    _
  %s7 = ssub.s32 1, %s5
  %s8 = scalar_select 0, %s7, %s5
  $region1: #{mlp_block.3} parent=0
    #allocation2 [shape = 'u8[8192]{0}', space=vmem, size = 0x2000, scoped, tag = 'output window, operand 0, single buffered']
    #allocation3 [shape = 's32[1]{0}', space=sflag, size = 0x4, scoped, tag = 'scoped memory for mlp_block.3']
    %9 = vsyncpa [#allocation3], 0
    // Predicated region
    $region2: #{mlp_block.3} parent=1 // pred_check
      _
    $region3: #{mlp_block.3} parent=1 // pred_check_branch
      %11 = sbr.rel (0) target = $region5
    $region4: #{mlp_block.3} parent=1 // pred_region
      _
    $region5: #{mlp_block.3} parent=1 // pred_fallthru
      _
    // Predicated region
    $region6: #{mlp_block.3} parent=1 // pred_check
      _
    $region7: #{mlp_block.3} parent=1 // pred_check_branch
      %13 = sbr.rel (0) target = $region9
    $region8: #{mlp_block.3} parent=1 // pred_region
      _
    $region9: #{mlp_block.3} parent=1 // pred_fallthru
      _
    // Predicated region
    $region10: #{mlp_block.3} parent=1 // pred_check
      _
    $region11: #{mlp_block.3} parent=1 // pred_check_branch
      %15 = sbr.rel (0) target = $region13
    $region12: #{mlp_block.3} parent=1 // pred_region
      _
    $region13: #{mlp_block.3} parent=1 // pred_fallthru
      _
    // Predicated region
    $region14: #{mlp_block.3} parent=1 // pred_check
      _
    $region15: #{mlp_block.3} parent=1 // pred_check_branch
      %17 = sbr.rel (0) target = $region17
    $region16: #{mlp_block.3} parent=1 // pred_region
      _
    $region17: #{mlp_block.3} parent=1 // pred_fallthru
      _
    %v18 = vld [vmem:[%s1] sm:$0x3]
    %v19 = vld [vmem:[%s2] sm:$0x1]
    %v20 = vld [vmem:[%s3] sm:$0x1]
    %v21 = vadd.f32 %v18, 0.0
    %v22 = vmul.f32 %v21, 0.0625
    %v23 = vmul.f32 %v22, %v22
    %v25 = vrot.slane %v23, 7
    %v27 = vsub.f32 %v22, %v25
    %v28 = vmax.f32 %v27, 0.0
    %v29 = vadd.f32 %v28, 1e-05
    %v30 = vrsqrt.pop %v29
    %v33 = vunpack.c.l.s4 1966171168
    %v34 = vunpack.c.0.s8 %v33
    %v35 = vlaneseq
    %v36 = vshrl.u32 %v35, 7
    %v37 = vsub.s32 %v34, %v36
    %v38 = vrot.slane %v30, %v37
    %v39 = vcombine.high %v38, %v38
    %v41 = vunpack.c.l.s4 1966171168
    %v42 = vunpack.c.0.s8 %v41
    %v43 = vlaneseq
    %v44 = vshrl.u32 %v43, 7
    %v45 = vsub.s32 %v42, %v44
    %v46 = vrot.slane %v39, %v45
    %v48 = vmul.f32 %v19, %v46
    %v49 = vmul.f32 %v22, %v48
    %v50 = vsub.f32 %v20, %v49
    %v51 = vld [vmem:[%s0] sm:$0xf]
    %v52 = vld [vmem:[%s0 + $0x4] sm:$0xf]
    %v53 = vunpack.c.l.bf16 %v51
    %v54 = vunpack.c.l.bf16 %v52
    %v56 = vlaneseq
    %v57 = vshrl.u32 %v56, 7
    %v58 = vsub.s32 0, %v57
    %v59 = vrot.slane %v48, %v58
    %v61 = vmul.f32 %v53, %v59
    %v62 = vmul.f32 %v54, %v59
    %v64 = vlaneseq
    %v65 = vshrl.u32 %v64, 7
    %v66 = vsub.s32 0, %v65
    %v67 = vrot.slane %v50, %v66
    %v69 = vadd.f32 %v61, %v67
    %v70 = vadd.f32 %v62, %v67
    %vm71 = vcmask 130048
    %72 = vst.msk [vmem:[#allocation2] sm:$0xff] %vm71, %v69
    %73 = vst.msk [vmem:[#allocation2 + $0x8] sm:$0xff] %vm71, %v70
    // Predicated region
    $region18: #{mlp_block.3} parent=1 // pred_check
      _
    $region19: #{mlp_block.3} parent=1 // pred_check_branch
      %75 = sbr.rel (0) target = $region21
    $region20: #{mlp_block.3} parent=1 // pred_region
      %s77 = ssub.s32 256, 256
      %78 = vsyncadd [#allocation3], %s77
      %s79 = sshll.u32 [#allocation2], 4
      %s80 = int_to_ptr.vmem [resolvable:$true] %s79
      %85 = dma.vmem_to_hbm [thread:$0]  %s80, 256, %s4, [#allocation3], 128, 128, 8
    $region21: #{mlp_block.3} parent=1 // pred_fallthru
      _
    // Predicated region
    $region22: #{mlp_block.3} parent=1 // pred_check
      _
    $region23: #{mlp_block.3} parent=1 // pred_check_branch
      %87 = sbr.rel (0) target = $region25
    $region24: #{mlp_block.3} parent=1 // pred_region
      %88 = dma.done [#allocation3], 256
    $region25: #{mlp_block.3} parent=1 // pred_fallthru
      _
    %89 = vsyncpa [#allocation3], 1

// kernel: mlp_block.2
$region0: #{mlp_block.2}
  #allocation0 [shape = 'u32[]', space=smem, size = 0x4, offset = 0x4, fixed_abs, tag = 'smem constant byte address 0x4 - core index']
  #allocation1 [shape = 'u32[144,128]{1,0:T(1,128)}', space=vmem, size = 0x12000, scoped, tag = 'internal scratch']
  %s0 = inlined_call_operand.vmem [shape: bf16[16,16], index: 0, kind: input, shape index: {}]
  %s1 = inlined_call_operand.vmem [shape: bf16[16,128], index: 1, kind: input, shape index: {}]
  %s2 = inlined_call_operand.vmem [shape: f32[1,128], index: 2, kind: input, shape index: {}]
  %s3 = inlined_call_operand.vmem [shape: bf16[128,128], index: 3, kind: input, shape index: {}]
  %s4 = inlined_call_operand.vmem [shape: f32[1,128], index: 4, kind: input, shape index: {}]
  %s5 = inlined_call_operand.vmem [shape: bf16[16,128], index: 5, kind: output, shape index: {0}]
  %s6 = inlined_call_operand.vmem [shape: f32[1,2,128], index: 6, kind: output, shape index: {1}]
  %7 = xla_tuple %s5, %s6
  %s8 = sld [smem:[#allocation0]]
  $region38: #{mlp_block.2} parent=0
    _
  %s10 = ssub.s32 1, %s8
  %s11 = scalar_select 0, %s10, %s8
  // Predicated region
  $region2: #{mlp_block.2} parent=0 // pred_check
    _
  $region3: #{mlp_block.2} parent=0 // pred_check_branch
    %13 = sbr.rel (0) target = $region5
  $region4: #{mlp_block.2} parent=0 // pred_region
    _
  $region5: #{mlp_block.2} parent=0 // pred_fallthru
    _
  // Predicated region
  $region6: #{mlp_block.2} parent=0 // pred_check
    _
  $region7: #{mlp_block.2} parent=0 // pred_check_branch
    %15 = sbr.rel (0) target = $region9
  $region8: #{mlp_block.2} parent=0 // pred_region
    _
  $region9: #{mlp_block.2} parent=0 // pred_fallthru
    _
  // Predicated region
  $region10: #{mlp_block.2} parent=0 // pred_check
    _
  $region11: #{mlp_block.2} parent=0 // pred_check_branch
    %17 = sbr.rel (0) target = $region13
  $region12: #{mlp_block.2} parent=0 // pred_region
    _
  $region13: #{mlp_block.2} parent=0 // pred_fallthru
    _
  // Predicated region
  $region14: #{mlp_block.2} parent=0 // pred_check
    _
  $region15: #{mlp_block.2} parent=0 // pred_check_branch
    %19 = sbr.rel (0) target = $region17
  $region16: #{mlp_block.2} parent=0 // pred_region
    _
  $region17: #{mlp_block.2} parent=0 // pred_fallthru
    _
  // Predicated region
  $region18: #{mlp_block.2} parent=0 // pred_check
    _
  $region19: #{mlp_block.2} parent=0 // pred_check_branch
    %21 = sbr.rel (0) target = $region21
  $region20: #{mlp_block.2} parent=0 // pred_region
    _
  $region21: #{mlp_block.2} parent=0 // pred_fallthru
    _
  %v23 = vld [vmem:[%s0] sm:$0xf]
  %v24 = vld [vmem:[%s0 + $0x4] sm:$0xf]
  %v25 = vld [vmem:[%s1] sm:$0xf]
  %v26 = vld [vmem:[%s1 + $0x4] sm:$0xf]
  %v27 = vld [vmem:[%s2] sm:$0x1]
  %v29 = vlaneseq
  %v30 = vshrl.u32 %v29, 7
  %v31 = vsub.s32 0, %v30
  %v32 = vrot.slane %v27, %v31
  %v36 = vunpack.c.l.b16 %v23
  %v37 = vunpack.c.l.b16 %v24
  %v38 = vpack.c.b16 %v37, %v36
  %v41 = vunpack.c.l.b16 %v25
  %v42 = vunpack.c.l.b16 %v26
  %v43 = vpack.c.b16 %v42, %v41
  %vm45 = vcmask 130048
  %v47 = vsel %vm45, %v38, 0
  %49 = vmatprep.subr.bf16.mxu0 0
  %50 = vmatpush1.bf16.msra.mxu0 0
  %51 = vmatprep.subr.bf16.mxu0 0
  %52 = vmatpush1.bf16.msra.mxu0 0
  %53 = vmatprep.subr.bf16.mxu0 0
  %54 = vmatpush1.bf16.msra.mxu0 0
  %55 = vmatprep.subr.bf16.mxu0 0
  %56 = vmatpush1.bf16.msra.mxu0 0
  %57 = vmatprep.subr.bf16.mxu0 0
  %58 = vmatpush1.bf16.msra.mxu0 0
  %59 = vmatprep.subr.bf16.mxu0 0
  %60 = vmatpush1.bf16.msra.mxu0 0
  %61 = vmatprep.subr.bf16.mxu0 0
  %62 = vmatpush1.bf16.msra.mxu0 0
  %63 = vmatprep.subr.bf16.mxu0 0
  %64 = vmatpush1.bf16.msra.mxu0 %v43
  %65 = vmatprep.subr.bf16.mxu0 0
  %66 = vmatpush2.bf16.msra.mxu0 0
  %67 = vmatprep.subr.bf16.mxu0 0
  %68 = vmatpush2.bf16.msra.mxu0 0
  %69 = vmatprep.subr.bf16.mxu0 0
  %70 = vmatpush2.bf16.msra.mxu0 0
  %71 = vmatprep.subr.bf16.mxu0 0
  %72 = vmatpush2.bf16.msra.mxu0 0
  %73 = vmatprep.subr.bf16.mxu0 0
  %74 = vmatpush2.bf16.msra.mxu0 0
  %75 = vmatprep.subr.bf16.mxu0 0
  %76 = vmatpush2.bf16.msra.mxu0 0
  %77 = vmatprep.subr.bf16.mxu0 0
  %78 = vmatpush2.bf16.msra.mxu0 0
  %79 = vmatprep.subr.bf16.mxu0 0
  %80 = vmatpush2.bf16.msra.mxu0 0
  %81 = vmatprep.mubr.bf16.mxu0 0
  %82 = vmatmul.mubr.bf16.gmra.mxu0 %v47
  %v83 = vpop.f32.mrf.mxu0
  %v84 = vadd.f32 %v32, %v83
  %v85 = vpop.f32.mrf.mxu0
  %v86 = vpop.f32.mrf.mxu0
  %v87 = vadd.f32 %v32, %v86
  %v88 = vpop.f32.mrf.mxu0
  %89 = vdwg.mxu0
  %vm90 = vcmp.gt.f32.partialorder %v84, 0.0
  %vm91 = vcmp.gt.f32.partialorder %v87, 0.0
  %v92 = vmin.f32 %v84, 0.0
  %v93 = vmin.f32 %v87, 0.0
  %v94 = vmul.f32 %v92, 1.442695
  %v95 = vpow.pop %v94
  %v96 = vmul.f32 %v93, 1.442695
  %v97 = vpow.pop %v96
  %v98 = vsub.f32 %v95, 1.0
  %v99 = vsub.f32 %v97, 1.0
  %v100 = vsel %vm90, %v84, %v98
  %v101 = vsel %vm91, %v87, %v99
  %v102 = vpack.c.bf16 %v101, %v100
  %v103 = vld [vmem:[%s3] sm:$0xf]
  %v104 = vld [vmem:[%s3 + $0x4] sm:$0xf]
  %v105 = vld [vmem:[%s3 + $0x8] sm:$0xf]
  %v106 = vld [vmem:[%s3 + $0xc] sm:$0xf]
  %v107 = vld [vmem:[%s3 + $0x10] sm:$0xf]
  %v108 = vld [vmem:[%s3 + $0x14] sm:$0xf]
  %v109 = vld [vmem:[%s3 + $0x18] sm:$0xf]
  %v110 = vld [vmem:[%s3 + $0x1c] sm:$0xf]
  %v111 = vld [vmem:[%s3 + $0x20] sm:$0xf]
  %v112 = vld [vmem:[%s3 + $0x24] sm:$0xf]
  %v113 = vld [vmem:[%s3 + $0x28] sm:$0xf]
  %v114 = vld [vmem:[%s3 + $0x2c] sm:$0xf]
  %v115 = vld [vmem:[%s3 + $0x30] sm:$0xf]
  %v116 = vld [vmem:[%s3 + $0x34] sm:$0xf]
  %v117 = vld [vmem:[%s3 + $0x38] sm:$0xf]
  %v118 = vld [vmem:[%s3 + $0x3c] sm:$0xf]
  %v119 = vld [vmem:[%s4] sm:$0x1]
  %v121 = vlaneseq
  %v122 = vshrl.u32 %v121, 7
  %v123 = vsub.s32 0, %v122
  %v124 = vrot.slane %v119, %v123
  %v142 = vunpack.c.l.b16 %v103
  %v143 = vunpack.c.l.b16 %v104
  %v144 = vunpack.c.l.b16 %v105
  %v145 = vunpack.c.l.b16 %v106
  %v146 = vunpack.c.l.b16 %v107
  %v147 = vunpack.c.l.b16 %v108
  %v148 = vunpack.c.l.b16 %v109
  %v149 = vunpack.c.l.b16 %v110
  %v150 = vunpack.c.l.b16 %v111
  %v151 = vunpack.c.l.b16 %v112
  %v152 = vunpack.c.l.b16 %v113
  %v153 = vunpack.c.l.b16 %v114
  %v154 = vunpack.c.l.b16 %v115
  %v155 = vunpack.c.l.b16 %v116
  %v156 = vunpack.c.l.b16 %v117
  %v157 = vunpack.c.l.b16 %v118
  %v158 = vpack.c.b16 %v143, %v142
  %v159 = vpack.c.b16 %v145, %v144
  %v160 = vpack.c.b16 %v147, %v146
  %v161 = vpack.c.b16 %v149, %v148
  %v162 = vpack.c.b16 %v151, %v150
  %v163 = vpack.c.b16 %v153, %v152
  %v164 = vpack.c.b16 %v155, %v154
  %v165 = vpack.c.b16 %v157, %v156
  %174 = vmatprep.subr.bf16.mxu0 0
  %175 = vmatpush1.bf16.msra.mxu0 %v165
  %176 = vmatprep.subr.bf16.mxu0 0
  %177 = vmatpush1.bf16.msra.mxu0 %v164
  %178 = vmatprep.subr.bf16.mxu0 0
  %179 = vmatpush1.bf16.msra.mxu0 %v163
  %180 = vmatprep.subr.bf16.mxu0 0
  %181 = vmatpush1.bf16.msra.mxu0 %v162
  %182 = vmatprep.subr.bf16.mxu0 0
  %183 = vmatpush1.bf16.msra.mxu0 %v161
  %184 = vmatprep.subr.bf16.mxu0 0
  %185 = vmatpush1.bf16.msra.mxu0 %v160
  %186 = vmatprep.subr.bf16.mxu0 0
  %187 = vmatpush1.bf16.msra.mxu0 %v159
  %188 = vmatprep.subr.bf16.mxu0 0
  %189 = vmatpush1.bf16.msra.mxu0 %v158
  %190 = vmatprep.subr.bf16.mxu0 0
  %191 = vmatpush2.bf16.msra.mxu0 0
  %192 = vmatprep.subr.bf16.mxu0 0
  %193 = vmatpush2.bf16.msra.mxu0 0
  %194 = vmatprep.subr.bf16.mxu0 0
  %195 = vmatpush2.bf16.msra.mxu0 0
  %196 = vmatprep.subr.bf16.mxu0 0
  %197 = vmatpush2.bf16.msra.mxu0 0
  %198 = vmatprep.subr.bf16.mxu0 0
  %199 = vmatpush2.bf16.msra.mxu0 0
  %200 = vmatprep.subr.bf16.mxu0 0
  %201 = vmatpush2.bf16.msra.mxu0 0
  %202 = vmatprep.subr.bf16.mxu0 0
  %203 = vmatpush2.bf16.msra.mxu0 0
  %204 = vmatprep.subr.bf16.mxu0 0
  %205 = vmatpush2.bf16.msra.mxu0 0
  %206 = vmatprep.mubr.bf16.mxu0 0
  %207 = vmatmul.mubr.bf16.gmra.mxu0 %v102
  %v208 = vpop.f32.mrf.mxu0
  %v209 = vadd.f32 %v124, %v208
  %v210 = vpop.f32.mrf.mxu0
  %v211 = vpop.f32.mrf.mxu0
  %v212 = vadd.f32 %v124, %v211
  %v213 = vpop.f32.mrf.mxu0
  %214 = vdwg.mxu0
  %vm215 = vcmp.gt.f32.partialorder %v209, 0.0
  %vm216 = vcmp.gt.f32.partialorder %v212, 0.0
  %v217 = vmin.f32 %v209, 0.0
  %v218 = vmin.f32 %v212, 0.0
  %v219 = vmul.f32 %v217, 1.442695
  %v220 = vpow.pop %v219
  %v221 = vmul.f32 %v218, 1.442695
  %v222 = vpow.pop %v221
  %v223 = vsub.f32 %v220, 1.0
  %v224 = vsub.f32 %v222, 1.0
  %v225 = vsel %vm215, %v209, %v223
  %v226 = vsel %vm216, %v212, %v224
  %v227 = vpack.c.bf16 %v226, %v225
  %v229 = vunpack.c.l.b16 %v227
  %v230 = vunpack.c.h.b16 %v227
  %v231 = vpack.c.b16 %v229, %v229
  %v232 = vpack.c.b16 %v230, %v230
  %235 = vst [vmem:[%s5] sm:$0xf] %v231
  %236 = vst [vmem:[%s5 + $0x4] sm:$0xf] %v232
  %v237 = vadd.f32 %v225, %v226
  %v238 = vrot.slane %v237, 4
  %v239 = vadd.f32 %v237, %v238
  %v240 = vrot.slane %v239, 2
  %v241 = vadd.f32 %v239, %v240
  %v242 = vrot.slane %v241, 1
  %v243 = vadd.f32 %v241, %v242
  %v244 = vmul.f32 %v225, %v225
  %v245 = vmul.f32 %v226, %v226
  %v246 = vadd.f32 %v244, %v245
  %v247 = vrot.slane %v246, 4
  %v248 = vadd.f32 %v246, %v247
  %v249 = vrot.slane %v248, 2
  %v250 = vadd.f32 %v248, %v249
  %v251 = vrot.slane %v250, 1
  %v252 = vadd.f32 %v250, %v251
  %vm253 = vcmask 1040384
  %v254 = vsel %vm253, %v243, %v252
  %255 = vst [vmem:[%s6] sm:$0x3] %v254
  // Predicated region
  $region22: #{mlp_block.2} parent=0 // pred_check
    _
  $region23: #{mlp_block.2} parent=0 // pred_check_branch
    %257 = sbr.rel (0) target = $region25
  $region24: #{mlp_block.2} parent=0 // pred_region
    _
  $region25: #{mlp_block.2} parent=0 // pred_fallthru
    _
  // Predicated region
  $region26: #{mlp_block.2} parent=0 // pred_check
    _
  $region27: #{mlp_block.2} parent=0 // pred_check_branch
    %259 = sbr.rel (0) target = $region29
  $region28: #{mlp_block.2} parent=0 // pred_region
    _
  $region29: #{mlp_block.2} parent=0 // pred_fallthru
    _
  // Predicated region
  $region30: #{mlp_block.2} parent=0 // pred_check
    _
  $region31: #{mlp_block.2} parent=0 // pred_check_branch
    %261 = sbr.rel (0) target = $region33
  $region32: #{mlp_block.2} parent=0 // pred_region
    _
  $region33: #{mlp_block.2} parent=0 // pred_fallthru
    _
  // Predicated region
  $region34: #{mlp_block.2} parent=0 // pred_check
    _
  $region35: #{mlp_block.2} parent=0 // pred_check_branch
    %263 = sbr.rel (0) target = $region37
  $region36: #{mlp_block.2} parent=0 // pred_region
    _
  $region37: #{mlp_block.2} parent=0 // pred_fallthru
    _

</llo_original>
